<compile_context>
chip_gen: v7x
topology: tpu7x:2x2x1
jax: 0.10.0
libtpu: 0.0.40
codegen_flags: <defaults>
</compile_context>

<pallas_src>
import functools

import jax
import jax.numpy as jnp
from jax.experimental import pallas as pl
from jax.experimental.pallas import tpu as pltpu


def _round_up(x, m):
    return ((x + m - 1) // m) * m


def _mlp_head_kernel(x_ref, w1_ref, b1_ref, w2_ref, b2_ref, w3_ref, b3_ref,
                     o_ref, *, mm_dtype):
    # In-kernel operand cast: rides a free VPU slot instead of a separate
    # wrapper-side XLA cast op (which would re-read/re-write x in HBM).
    x = x_ref[...].astype(mm_dtype)

    # Layer 1: Linear(inplanes -> hidden) + ReLU.
    # MXU accumulates in f32; bias-add / ReLU arithmetic stay f32 (v5e has no
    # bf16 VPU); the activation is STORED in bf16 to halve staging traffic.
    h = jnp.dot(x, w1_ref[...], preferred_element_type=jnp.float32)
    h = jnp.maximum(h + b1_ref[...], 0.0).astype(mm_dtype)

    # Layer 2: Linear(hidden -> hidden) + ReLU.
    h = jnp.dot(h, w2_ref[...], preferred_element_type=jnp.float32)
    h = jnp.maximum(h + b2_ref[...], 0.0).astype(mm_dtype)

    # Layer 3: Linear(hidden -> planes_padded), no activation.
    o = jnp.dot(h, w3_ref[...], preferred_element_type=jnp.float32)
    o_ref[...] = (o + b3_ref[...]).astype(o_ref.dtype)


@functools.partial(jax.jit, static_argnames=("tile_rows", "use_bf16"))
def dino_detr_mlp_head(x, params, *, tile_rows=1024, use_bf16=True):
    """Apply the 3-layer MLP head to x of shape (..., inplanes)."""
    w1, b1, w2, b2, w3, b3 = params
    inplanes, hidden = w1.shape
    planes = w3.shape[1]

    lead_shape = x.shape[:-1]
    n_rows = 1
    for d in lead_shape:
        n_rows *= d
    x2d = x.reshape(n_rows, inplanes)      # NO dtype cast here (done in-kernel)

    # ---------------- dtype handling -----------------------------------------
    # Weights as bf16 MXU operands; x is cast in-kernel; biases stay f32.
    mm_dtype = jnp.bfloat16 if use_bf16 else x.dtype
    w1 = w1.astype(mm_dtype)
    w2 = w2.astype(mm_dtype)
    w3 = w3.astype(mm_dtype)
    b1 = b1.astype(jnp.float32)
    b2 = b2.astype(jnp.float32)
    b3 = b3.astype(jnp.float32)

    # ---------------- lane-dense output: pad planes up to multiple of 128 ----
    out_lanes = _round_up(planes, 128)
    if out_lanes != planes:
        w3 = jnp.pad(w3, ((0, 0), (0, out_lanes - planes)))
        b3 = jnp.pad(b3, ((0, 0), (0, out_lanes - planes)))

    # ---------------- row tiling ----------------------------------------------
    # No explicit row padding: Pallas masks the ragged last block.  When more
    # than one block is needed, use an EVEN, balanced number of grid steps
    # (exactly 2 for typical sizes): near-minimal step overhead on v5e/v6e and
    # both TensorCores busy on v7x.
    tile_rows = max(16, (int(tile_rows) // 16) * 16)
    if n_rows <= tile_rows:
        tile = n_rows                       # single block == full dim (legal)
    else:
        n_steps = 2 * pl.cdiv(n_rows, 2 * tile_rows)
        tile = min(tile_rows, _round_up(pl.cdiv(n_rows, n_steps), 16))
    grid = (pl.cdiv(n_rows, tile),)

    # ---------------- VMEM budget (explicit limit, 48 MiB cap for v7x) -------
    x_itm = jnp.dtype(x.dtype).itemsize
    mm_itm = jnp.dtype(mm_dtype).itemsize
    out_itm = jnp.dtype(x.dtype).itemsize
    vmem_est = (
        2 * tile * inplanes * x_itm                                   # x tiles
        + 2 * tile * out_lanes * out_itm                              # out tiles
        + 2 * inplanes * hidden * mm_itm                              # W1
        + 2 * hidden * hidden * mm_itm                                # W2
        + 2 * hidden * out_lanes * mm_itm                             # W3
        + 2 * (2 * hidden + out_lanes) * 4                            # biases
        + 2 * tile * hidden * (4 + mm_itm)                            # f32+bf16 act
    )
    vmem_limit = int(min(48 * 2**20, max(32 * 2**20, 2 * vmem_est)))

    # ---------------- cost hint for the XLA scheduler -------------------------
    flops = 2 * n_rows * (inplanes * hidden + hidden * hidden
                          + hidden * out_lanes)
    bytes_accessed = (
        n_rows * inplanes * x_itm
        + (inplanes * hidden + hidden * hidden + hidden * out_lanes) * mm_itm
        + (2 * hidden + out_lanes) * 4
        + n_rows * out_lanes * out_itm)
    cost = pl.CostEstimate(flops=flops, transcendentals=0,
                           bytes_accessed=bytes_accessed)

    kernel = functools.partial(_mlp_head_kernel, mm_dtype=mm_dtype)

    out = pl.pallas_call(
        kernel,
        out_shape=jax.ShapeDtypeStruct((n_rows, out_lanes), x.dtype),
        grid_spec=pltpu.PrefetchScalarGridSpec(
            num_scalar_prefetch=0,
            grid=grid,
            in_specs=[
                # x tile: (tile, inplanes), marched along the row axis.
                pl.BlockSpec((tile, inplanes), lambda i: (i, 0)),
                # Weights / biases: full arrays, resident across the grid.
                pl.BlockSpec((inplanes, hidden), lambda i: (0, 0)),
                pl.BlockSpec((1, hidden), lambda i: (0, 0)),
                pl.BlockSpec((hidden, hidden), lambda i: (0, 0)),
                pl.BlockSpec((1, hidden), lambda i: (0, 0)),
                pl.BlockSpec((hidden, out_lanes), lambda i: (0, 0)),
                pl.BlockSpec((1, out_lanes), lambda i: (0, 0)),
            ],
            out_specs=pl.BlockSpec((tile, out_lanes), lambda i: (i, 0)),
        ),
        compiler_params=pltpu.CompilerParams(
            dimension_semantics=("parallel",),
            vmem_limit_bytes=vmem_limit),
        cost_estimate=cost,
    )(x2d, w1, b1, w2, b2, w3, b3)

    out = out[:, :planes]
    return out.reshape(*lead_shape, planes)


def init_mlp_head_params(key, inplanes, hidden_inplanes, planes,
                         dtype=jnp.float32):
    """Deterministic synthetic init matching nn.Linear shapes.

    PyTorch stores Linear weight as (out, in); we keep the transposed
    (in, out) layout so the kernel computes x @ W + b directly.
    """
    k1, k2, k3 = jax.random.split(key, 3)

    def linear(k, fan_in, fan_out):
        kw, kb = jax.random.split(k)
        bound = 1.0 / jnp.sqrt(fan_in)
        w = jax.random.uniform(kw, (fan_in, fan_out), dtype, -bound, bound)
        b = jax.random.uniform(kb, (1, fan_out), dtype, -bound, bound)
        return w, b

    w1, b1 = linear(k1, inplanes, hidden_inplanes)
    w2, b2 = linear(k2, hidden_inplanes, hidden_inplanes)
    w3, b3 = linear(k3, hidden_inplanes, planes)
    return (w1, b1, w2, b2, w3, b3)


def _reference(x, params, use_bf16=True):
    """Pure-JAX reference emulating the kernel's bf16-operand / f32-accum path."""
    w1, b1, w2, b2, w3, b3 = params
    mm = jnp.bfloat16 if use_bf16 else x.dtype

    def dot(a, w):
        return jnp.dot(a.astype(mm), w.astype(mm),
                       preferred_element_type=jnp.float32)

    h = jnp.maximum(dot(x, w1) + b1[0], 0.0)
    h = jnp.maximum(dot(h, w2) + b2[0], 0.0)
    return dot(h, w3) + b3[0]


if __name__ == "__main__":
    key = jax.random.PRNGKey(0)
    kx, kp = jax.random.split(key)

    # Small DINO-DETR-like shapes: (batch, num_queries, inplanes) -> planes.
    batch, num_queries = 2, 8
    inplanes, hidden_inplanes, planes = 32, 32, 4

    x = jax.random.normal(kx, (batch, num_queries, inplanes), jnp.float32)
    params = init_mlp_head_params(kp, inplanes, hidden_inplanes, planes)

    out = dino_detr_mlp_head(x, params)
    out = jax.block_until_ready(out)

    ref = _reference(x.reshape(-1, inplanes), params).reshape(
        batch, num_queries, planes)
    assert out.shape == (batch, num_queries, planes), out.shape
    err = float(jnp.max(jnp.abs(out - ref)))
    assert err < 5e-3, err

    print("KERNEL_OK")
</pallas_src>

<mosaic_0001>
module attributes {stable_mosaic.version = 11 : i64} {
  func.func @_mlp_head_kernel(%arg0: i32, %arg1: memref<16x32xf32, #tpu.memory_space<vmem>>, %arg2: memref<32x32xbf16, #tpu.memory_space<vmem>>, %arg3: memref<1x32xf32, #tpu.memory_space<vmem>>, %arg4: memref<32x32xbf16, #tpu.memory_space<vmem>>, %arg5: memref<1x32xf32, #tpu.memory_space<vmem>>, %arg6: memref<32x128xbf16, #tpu.memory_space<vmem>>, %arg7: memref<1x128xf32, #tpu.memory_space<vmem>>, %arg8: memref<16x128xf32, #tpu.memory_space<vmem>>) attributes {dimension_semantics = [#tpu.dimension_semantics<parallel>], iteration_bounds = array<i64: 1>, scalar_prefetch = 0 : i64, scratch_operands = 0 : i64, tpu.core_type = #tpu.core_type<tc>, window_params = [{transform_indices = @transform_0, window_bounds = array<i64: 16, 32>}, {pipeline_mode = #tpu.pipeline_mode<synchronous>, transform_indices = @transform_1, window_bounds = array<i64: 32, 32>}, {pipeline_mode = #tpu.pipeline_mode<synchronous>, transform_indices = @transform_2, window_bounds = array<i64: 1, 32>}, {pipeline_mode = #tpu.pipeline_mode<synchronous>, transform_indices = @transform_3, window_bounds = array<i64: 32, 32>}, {pipeline_mode = #tpu.pipeline_mode<synchronous>, transform_indices = @transform_4, window_bounds = array<i64: 1, 32>}, {pipeline_mode = #tpu.pipeline_mode<synchronous>, transform_indices = @transform_5, window_bounds = array<i64: 32, 128>}, {pipeline_mode = #tpu.pipeline_mode<synchronous>, transform_indices = @transform_6, window_bounds = array<i64: 1, 128>}, {transform_indices = @transform_7, window_bounds = array<i64: 16, 128>}]} {
    %c0 = arith.constant 0 : index
    %c0_0 = arith.constant 0 : index
    %0 = vector.load %arg1[%c0, %c0_0] : memref<16x32xf32, #tpu.memory_space<vmem>>, vector<16x32xf32>
    %1 = arith.truncf %0 : vector<16x32xf32> to vector<16x32xbf16>
    %c0_1 = arith.constant 0 : index
    %c0_2 = arith.constant 0 : index
    %2 = vector.load %arg2[%c0_1, %c0_2] : memref<32x32xbf16, #tpu.memory_space<vmem>>, vector<32x32xbf16>
    %cst = arith.constant dense<0.000000e+00> : vector<16x32xf32>
    %3 = tpu.matmul %1, %2, %cst {dimension_numbers = #tpu.dot_dimension_numbers<[1], [0], [0], [1], [0, 0, 1, 1], [], []>} : vector<16x32xbf16>, vector<32x32xbf16>, vector<16x32xf32> -> vector<16x32xf32>
    %c0_3 = arith.constant 0 : index
    %c0_4 = arith.constant 0 : index
    %4 = vector.load %arg3[%c0_3, %c0_4] : memref<1x32xf32, #tpu.memory_space<vmem>>, vector<1x32xf32>
    %5 = vector.broadcast %4 : vector<1x32xf32> to vector<16x32xf32>
    %6 = arith.addf %3, %5 : vector<16x32xf32>
    %cst_5 = arith.constant 0.000000e+00 : f32
    %7 = vector.broadcast %cst_5 : f32 to vector<16x32xf32>
    %8 = arith.maximumf %6, %7 : vector<16x32xf32>
    %9 = arith.truncf %8 : vector<16x32xf32> to vector<16x32xbf16>
    %c0_6 = arith.constant 0 : index
    %c0_7 = arith.constant 0 : index
    %10 = vector.load %arg4[%c0_6, %c0_7] : memref<32x32xbf16, #tpu.memory_space<vmem>>, vector<32x32xbf16>
    %cst_8 = arith.constant dense<0.000000e+00> : vector<16x32xf32>
    %11 = tpu.matmul %9, %10, %cst_8 {dimension_numbers = #tpu.dot_dimension_numbers<[1], [0], [0], [1], [0, 0, 1, 1], [], []>} : vector<16x32xbf16>, vector<32x32xbf16>, vector<16x32xf32> -> vector<16x32xf32>
    %c0_9 = arith.constant 0 : index
    %c0_10 = arith.constant 0 : index
    %12 = vector.load %arg5[%c0_9, %c0_10] : memref<1x32xf32, #tpu.memory_space<vmem>>, vector<1x32xf32>
    %13 = vector.broadcast %12 : vector<1x32xf32> to vector<16x32xf32>
    %14 = arith.addf %11, %13 : vector<16x32xf32>
    %cst_11 = arith.constant 0.000000e+00 : f32
    %15 = vector.broadcast %cst_11 : f32 to vector<16x32xf32>
    %16 = arith.maximumf %14, %15 : vector<16x32xf32>
    %17 = arith.truncf %16 : vector<16x32xf32> to vector<16x32xbf16>
    %c0_12 = arith.constant 0 : index
    %c0_13 = arith.constant 0 : index
    %18 = vector.load %arg6[%c0_12, %c0_13] : memref<32x128xbf16, #tpu.memory_space<vmem>>, vector<32x128xbf16>
    %cst_14 = arith.constant dense<0.000000e+00> : vector<16x128xf32>
    %19 = tpu.matmul %17, %18, %cst_14 {dimension_numbers = #tpu.dot_dimension_numbers<[1], [0], [0], [1], [0, 0, 1, 1], [], []>} : vector<16x32xbf16>, vector<32x128xbf16>, vector<16x128xf32> -> vector<16x128xf32>
    %c0_15 = arith.constant 0 : index
    %c0_16 = arith.constant 0 : index
    %20 = vector.load %arg7[%c0_15, %c0_16] : memref<1x128xf32, #tpu.memory_space<vmem>>, vector<1x128xf32>
    %21 = vector.broadcast %20 : vector<1x128xf32> to vector<16x128xf32>
    %22 = arith.addf %19, %21 : vector<16x128xf32>
    %c0_17 = arith.constant 0 : index
    %c0_18 = arith.constant 0 : index
    %23 = vector.load %arg8[%c0_17, %c0_18] : memref<16x128xf32, #tpu.memory_space<vmem>>, vector<16x128xf32>
    tpu.vector_store %arg8[%c0_17, %c0_18], %22 {strides = array<i32>} : memref<16x128xf32, #tpu.memory_space<vmem>>, vector<16x128xf32>,
    return
  }
  func.func @transform_0(%arg0: i32) -> (i32, i32) {
    %c0_i32 = arith.constant 0 : i32
    %c0_i32_0 = arith.constant 0 : i32
    return %arg0, %c0_i32 : i32, i32
  }
  func.func @transform_1(%arg0: i32) -> (i32, i32) {
    %c0_i32 = arith.constant 0 : i32
    %c0_i32_0 = arith.constant 0 : i32
    %c0_i32_1 = arith.constant 0 : i32
    return %c0_i32, %c0_i32_0 : i32, i32
  }
  func.func @transform_2(%arg0: i32) -> (i32, i32) {
    %c0_i32 = arith.constant 0 : i32
    %c0_i32_0 = arith.constant 0 : i32
    %c0_i32_1 = arith.constant 0 : i32
    return %c0_i32, %c0_i32_0 : i32, i32
  }
  func.func @transform_3(%arg0: i32) -> (i32, i32) {
    %c0_i32 = arith.constant 0 : i32
    %c0_i32_0 = arith.constant 0 : i32
    %c0_i32_1 = arith.constant 0 : i32
    return %c0_i32, %c0_i32_0 : i32, i32
  }
  func.func @transform_4(%arg0: i32) -> (i32, i32) {
    %c0_i32 = arith.constant 0 : i32
    %c0_i32_0 = arith.constant 0 : i32
    %c0_i32_1 = arith.constant 0 : i32
    return %c0_i32, %c0_i32_0 : i32, i32
  }
  func.func @transform_5(%arg0: i32) -> (i32, i32) {
    %c0_i32 = arith.constant 0 : i32
    %c0_i32_0 = arith.constant 0 : i32
    %c0_i32_1 = arith.constant 0 : i32
    return %c0_i32, %c0_i32_0 : i32, i32
  }
  func.func @transform_6(%arg0: i32) -> (i32, i32) {
    %c0_i32 = arith.constant 0 : i32
    %c0_i32_0 = arith.constant 0 : i32
    %c0_i32_1 = arith.constant 0 : i32
    return %c0_i32, %c0_i32_0 : i32, i32
  }
  func.func @transform_7(%arg0: i32) -> (i32, i32) {
    %c0_i32 = arith.constant 0 : i32
    %c0_i32_0 = arith.constant 0 : i32
    return %arg0, %c0_i32 : i32, i32
  }
}

</mosaic_0001>

<llo_original>
// kernel: dino_detr_mlp_head.1
$region0: #{dino_detr_mlp_head.1}
  #allocation0 [shape = 'u32[]', space=smem, size = 0x4, offset = 0x4, fixed_abs, tag = 'smem constant byte address 0x4 - core index']
  #allocation1 [shape = 'u32[144,128]{1,0:T(1,128)}', space=vmem, size = 0x12000, scoped, tag = 'internal scratch']
  %s0 = inlined_call_operand.vmem [shape: f32[16,32], index: 0, kind: input, shape index: {}]
  %s1 = inlined_call_operand.vmem [shape: bf16[32,32], index: 1, kind: input, shape index: {}]
  %s2 = inlined_call_operand.vmem [shape: f32[1,32], index: 2, kind: input, shape index: {}]
  %s3 = inlined_call_operand.vmem [shape: bf16[32,32], index: 3, kind: input, shape index: {}]
  %s4 = inlined_call_operand.vmem [shape: f32[1,32], index: 4, kind: input, shape index: {}]
  %s5 = inlined_call_operand.vmem [shape: bf16[32,128], index: 5, kind: input, shape index: {}]
  %s6 = inlined_call_operand.vmem [shape: f32[1,128], index: 6, kind: input, shape index: {}]
  %s7 = inlined_call_operand.vmem [shape: f32[16,128], index: 7, kind: output, shape index: {}]
  %s8 = sld [smem:[#allocation0]]
  $region38: #{dino_detr_mlp_head.1} parent=0
    _
  %s10 = ssub.s32 1, %s8
  %s11 = scalar_select 0, %s10, %s8
  // Predicated region
  $region2: #{dino_detr_mlp_head.1} parent=0 // pred_check
    _
  $region3: #{dino_detr_mlp_head.1} parent=0 // pred_check_branch
    %13 = sbr.rel (0) target = $region5
  $region4: #{dino_detr_mlp_head.1} parent=0 // pred_region
    _
  $region5: #{dino_detr_mlp_head.1} parent=0 // pred_fallthru
    _
  // Predicated region
  $region6: #{dino_detr_mlp_head.1} parent=0 // pred_check
    _
  $region7: #{dino_detr_mlp_head.1} parent=0 // pred_check_branch
    %15 = sbr.rel (0) target = $region9
  $region8: #{dino_detr_mlp_head.1} parent=0 // pred_region
    _
  $region9: #{dino_detr_mlp_head.1} parent=0 // pred_fallthru
    _
  // Predicated region
  $region10: #{dino_detr_mlp_head.1} parent=0 // pred_check
    _
  $region11: #{dino_detr_mlp_head.1} parent=0 // pred_check_branch
    %17 = sbr.rel (0) target = $region13
  $region12: #{dino_detr_mlp_head.1} parent=0 // pred_region
    _
  $region13: #{dino_detr_mlp_head.1} parent=0 // pred_fallthru
    _
  // Predicated region
  $region14: #{dino_detr_mlp_head.1} parent=0 // pred_check
    _
  $region15: #{dino_detr_mlp_head.1} parent=0 // pred_check_branch
    %19 = sbr.rel (0) target = $region17
  $region16: #{dino_detr_mlp_head.1} parent=0 // pred_region
    _
  $region17: #{dino_detr_mlp_head.1} parent=0 // pred_fallthru
    _
  // Predicated region
  $region18: #{dino_detr_mlp_head.1} parent=0 // pred_check
    _
  $region19: #{dino_detr_mlp_head.1} parent=0 // pred_check_branch
    %21 = sbr.rel (0) target = $region21
  $region20: #{dino_detr_mlp_head.1} parent=0 // pred_region
    _
  $region21: #{dino_detr_mlp_head.1} parent=0 // pred_fallthru
    _
  // Predicated region
  $region22: #{dino_detr_mlp_head.1} parent=0 // pred_check
    _
  $region23: #{dino_detr_mlp_head.1} parent=0 // pred_check_branch
    %23 = sbr.rel (0) target = $region25
  $region24: #{dino_detr_mlp_head.1} parent=0 // pred_region
    _
  $region25: #{dino_detr_mlp_head.1} parent=0 // pred_fallthru
    _
  // Predicated region
  $region26: #{dino_detr_mlp_head.1} parent=0 // pred_check
    _
  $region27: #{dino_detr_mlp_head.1} parent=0 // pred_check_branch
    %25 = sbr.rel (0) target = $region29
  $region28: #{dino_detr_mlp_head.1} parent=0 // pred_region
    _
  $region29: #{dino_detr_mlp_head.1} parent=0 // pred_fallthru
    _
  %v27 = vld [vmem:[%s0] sm:$0xff]
  %v28 = vld [vmem:[%s0 + $0x8] sm:$0xff]
  %v29 = vpack.c.bf16 %v28, %v27
  %v30 = vld [vmem:[%s1] sm:$0xf]
  %v31 = vld [vmem:[%s1 + $0x4] sm:$0xf]
  %v32 = vld [vmem:[%s1 + $0x8] sm:$0xf]
  %v33 = vld [vmem:[%s1 + $0xc] sm:$0xf]
  %v34 = vld [vmem:[%s2] sm:$0x1]
  %v36 = vlaneseq
  %v37 = vshrl.u32 %v36, 7
  %v38 = vsub.s32 0, %v37
  %v39 = vrot.slane %v34, %v38
  %v45 = vunpack.c.l.b16 %v30
  %v46 = vunpack.c.l.b16 %v31
  %v47 = vunpack.c.l.b16 %v32
  %v48 = vunpack.c.l.b16 %v33
  %v49 = vpack.c.b16 %v46, %v45
  %v50 = vpack.c.b16 %v48, %v47
  %vm53 = vcmask 261120
  %v55 = vsel %vm53, %v29, 0
  %57 = vmatprep.subr.bf16.mxu0 0
  %58 = vmatpush1.bf16.msra.mxu0 %v49
  %59 = vmatprep.subr.bf16.mxu0 0
  %60 = vmatpush1.bf16.msra.mxu0 %v50
  %61 = vmatprep.subr.bf16.mxu0 0
  %62 = vmatpush1.bf16.msra.mxu0 0
  %63 = vmatprep.subr.bf16.mxu0 0
  %64 = vmatpush1.bf16.msra.mxu0 0
  %65 = vmatprep.subr.bf16.mxu0 0
  %66 = vmatpush1.bf16.msra.mxu0 0
  %67 = vmatprep.subr.bf16.mxu0 0
  %68 = vmatpush1.bf16.msra.mxu0 0
  %69 = vmatprep.subr.bf16.mxu0 0
  %70 = vmatpush1.bf16.msra.mxu0 0
  %71 = vmatprep.subr.bf16.mxu0 0
  %72 = vmatpush1.bf16.msra.mxu0 0
  %73 = vmatprep.subr.bf16.mxu0 0
  %74 = vmatpush1.bf16.msra.mxu0 0
  %75 = vmatprep.subr.bf16.mxu0 0
  %76 = vmatpush1.bf16.msra.mxu0 0
  %77 = vmatprep.subr.bf16.mxu0 0
  %78 = vmatpush1.bf16.msra.mxu0 0
  %79 = vmatprep.subr.bf16.mxu0 0
  %80 = vmatpush1.bf16.msra.mxu0 0
  %81 = vmatprep.subr.bf16.mxu0 0
  %82 = vmatpush1.bf16.msra.mxu0 0
  %83 = vmatprep.subr.bf16.mxu0 0
  %84 = vmatpush1.bf16.msra.mxu0 0
  %85 = vmatprep.subr.bf16.mxu0 0
  %86 = vmatpush1.bf16.msra.mxu0 0
  %87 = vmatprep.subr.bf16.mxu0 0
  %88 = vmatpush1.bf16.msra.mxu0 0
  %89 = vmatprep.mubr.bf16.mxu0 0
  %90 = vmatmul.mubr.bf16.gmra.mrb[0].mxu0 %v55
  %v91 = vpop.f32.mrb[0].mxu0
  %v92 = vadd.f32 %v39, %v91
  %v93 = vpop.f32.mrb[0].mxu0
  %v94 = vpop.f32.mrb[0].mxu0
  %v95 = vadd.f32 %v39, %v94
  %v96 = vpop.f32.mrb[0].mxu0
  %97 = vdwg.mxu0
  %v98 = vmax.f32 %v92, 0.0
  %v99 = vmax.f32 %v95, 0.0
  %v100 = vpack.c.bf16 %v99, %v98
  %v101 = vld [vmem:[%s3] sm:$0xf]
  %v102 = vld [vmem:[%s3 + $0x4] sm:$0xf]
  %v103 = vld [vmem:[%s3 + $0x8] sm:$0xf]
  %v104 = vld [vmem:[%s3 + $0xc] sm:$0xf]
  %v105 = vld [vmem:[%s4] sm:$0x1]
  %v107 = vlaneseq
  %v108 = vshrl.u32 %v107, 7
  %v109 = vsub.s32 0, %v108
  %v110 = vrot.slane %v105, %v109
  %v116 = vunpack.c.l.b16 %v101
  %v117 = vunpack.c.l.b16 %v102
  %v118 = vunpack.c.l.b16 %v103
  %v119 = vunpack.c.l.b16 %v104
  %v120 = vpack.c.b16 %v117, %v116
  %v121 = vpack.c.b16 %v119, %v118
  %v125 = vsel %vm53, %v100, 0
  %127 = vmatprep.subr.bf16.mxu0 0
  %128 = vmatpush1.bf16.msra.mxu0 %v120
  %129 = vmatprep.subr.bf16.mxu0 0
  %130 = vmatpush1.bf16.msra.mxu0 %v121
  %131 = vmatprep.subr.bf16.mxu0 0
  %132 = vmatpush1.bf16.msra.mxu0 0
  %133 = vmatprep.subr.bf16.mxu0 0
  %134 = vmatpush1.bf16.msra.mxu0 0
  %135 = vmatprep.subr.bf16.mxu0 0
  %136 = vmatpush1.bf16.msra.mxu0 0
  %137 = vmatprep.subr.bf16.mxu0 0
  %138 = vmatpush1.bf16.msra.mxu0 0
  %139 = vmatprep.subr.bf16.mxu0 0
  %140 = vmatpush1.bf16.msra.mxu0 0
  %141 = vmatprep.subr.bf16.mxu0 0
  %142 = vmatpush1.bf16.msra.mxu0 0
  %143 = vmatprep.subr.bf16.mxu0 0
  %144 = vmatpush1.bf16.msra.mxu0 0
  %145 = vmatprep.subr.bf16.mxu0 0
  %146 = vmatpush1.bf16.msra.mxu0 0
  %147 = vmatprep.subr.bf16.mxu0 0
  %148 = vmatpush1.bf16.msra.mxu0 0
  %149 = vmatprep.subr.bf16.mxu0 0
  %150 = vmatpush1.bf16.msra.mxu0 0
  %151 = vmatprep.subr.bf16.mxu0 0
  %152 = vmatpush1.bf16.msra.mxu0 0
  %153 = vmatprep.subr.bf16.mxu0 0
  %154 = vmatpush1.bf16.msra.mxu0 0
  %155 = vmatprep.subr.bf16.mxu0 0
  %156 = vmatpush1.bf16.msra.mxu0 0
  %157 = vmatprep.subr.bf16.mxu0 0
  %158 = vmatpush1.bf16.msra.mxu0 0
  %159 = vmatprep.mubr.bf16.mxu0 0
  %160 = vmatmul.mubr.bf16.gmra.mrb[0].mxu0 %v125
  %v161 = vpop.f32.mrb[0].mxu0
  %v162 = vadd.f32 %v110, %v161
  %v163 = vpop.f32.mrb[0].mxu0
  %v164 = vpop.f32.mrb[0].mxu0
  %v165 = vadd.f32 %v110, %v164
  %v166 = vpop.f32.mrb[0].mxu0
  %167 = vdwg.mxu0
  %v168 = vmax.f32 %v162, 0.0
  %v169 = vmax.f32 %v165, 0.0
  %v170 = vpack.c.bf16 %v169, %v168
  %v171 = vld [vmem:[%s5] sm:$0xf]
  %v172 = vld [vmem:[%s5 + $0x4] sm:$0xf]
  %v173 = vld [vmem:[%s5 + $0x8] sm:$0xf]
  %v174 = vld [vmem:[%s5 + $0xc] sm:$0xf]
  %v175 = vld [vmem:[%s6] sm:$0x1]
  %v177 = vlaneseq
  %v178 = vshrl.u32 %v177, 7
  %v179 = vsub.s32 0, %v178
  %v180 = vrot.slane %v175, %v179
  %v186 = vunpack.c.l.b16 %v171
  %v187 = vunpack.c.l.b16 %v172
  %v188 = vunpack.c.l.b16 %v173
  %v189 = vunpack.c.l.b16 %v174
  %v190 = vpack.c.b16 %v187, %v186
  %v191 = vpack.c.b16 %v189, %v188
  %v195 = vsel %vm53, %v170, 0
  %197 = vmatprep.subr.bf16.mxu0 0
  %198 = vmatpush1.bf16.msra.mxu0 %v190
  %199 = vmatprep.subr.bf16.mxu0 0
  %200 = vmatpush1.bf16.msra.mxu0 %v191
  %201 = vmatprep.subr.bf16.mxu0 0
  %202 = vmatpush1.bf16.msra.mxu0 0
  %203 = vmatprep.subr.bf16.mxu0 0
  %204 = vmatpush1.bf16.msra.mxu0 0
  %205 = vmatprep.subr.bf16.mxu0 0
  %206 = vmatpush1.bf16.msra.mxu0 0
  %207 = vmatprep.subr.bf16.mxu0 0
  %208 = vmatpush1.bf16.msra.mxu0 0
  %209 = vmatprep.subr.bf16.mxu0 0
  %210 = vmatpush1.bf16.msra.mxu0 0
  %211 = vmatprep.subr.bf16.mxu0 0
  %212 = vmatpush1.bf16.msra.mxu0 0
  %213 = vmatprep.subr.bf16.mxu0 0
  %214 = vmatpush1.bf16.msra.mxu0 0
  %215 = vmatprep.subr.bf16.mxu0 0
  %216 = vmatpush1.bf16.msra.mxu0 0
  %217 = vmatprep.subr.bf16.mxu0 0
  %218 = vmatpush1.bf16.msra.mxu0 0
  %219 = vmatprep.subr.bf16.mxu0 0
  %220 = vmatpush1.bf16.msra.mxu0 0
  %221 = vmatprep.subr.bf16.mxu0 0
  %222 = vmatpush1.bf16.msra.mxu0 0
  %223 = vmatprep.subr.bf16.mxu0 0
  %224 = vmatpush1.bf16.msra.mxu0 0
  %225 = vmatprep.subr.bf16.mxu0 0
  %226 = vmatpush1.bf16.msra.mxu0 0
  %227 = vmatprep.subr.bf16.mxu0 0
  %228 = vmatpush1.bf16.msra.mxu0 0
  %229 = vmatprep.mubr.bf16.mxu0 0
  %230 = vmatmul.mubr.bf16.gmra.mrb[0].mxu0 %v195
  %v231 = vpop.f32.mrb[0].mxu0
  %v232 = vadd.f32 %v180, %v231
  %v233 = vpop.f32.mrb[0].mxu0
  %v234 = vpop.f32.mrb[0].mxu0
  %v235 = vadd.f32 %v180, %v234
  %v236 = vpop.f32.mrb[0].mxu0
  %237 = vdwg.mxu0
  %238 = vst [vmem:[%s7] sm:$0xff] %v232
  %239 = vst [vmem:[%s7 + $0x8] sm:$0xff] %v235
  // Predicated region
  $region30: #{dino_detr_mlp_head.1} parent=0 // pred_check
    _
  $region31: #{dino_detr_mlp_head.1} parent=0 // pred_check_branch
    %241 = sbr.rel (0) target = $region33
  $region32: #{dino_detr_mlp_head.1} parent=0 // pred_region
    _
  $region33: #{dino_detr_mlp_head.1} parent=0 // pred_fallthru
    _
  // Predicated region
  $region34: #{dino_detr_mlp_head.1} parent=0 // pred_check
    _
  $region35: #{dino_detr_mlp_head.1} parent=0 // pred_check_branch
    %243 = sbr.rel (0) target = $region37
  $region36: #{dino_detr_mlp_head.1} parent=0 // pred_region
    _
  $region37: #{dino_detr_mlp_head.1} parent=0 // pred_fallthru
    _

</llo_original>
